<compile_context>
chip_gen: v7x
topology: tpu7x:2x2x1
jax: 0.10.0
libtpu: 0.0.40
codegen_flags: <defaults>
</compile_context>

<pallas_src>
import jax
import jax.numpy as jnp
from jax.experimental import pallas as pl
from jax.experimental.pallas import tpu as pltpu

_LANE = 128


# ----------------------------------- Pallas kernel --------------------------------------

def _batch_process_kernel(rot_ref, pos_ref, halo_ref,
                          vel_ref, pos_out_ref, rot_out_ref, root_ref):
    # rot_ref: (4, J, TN)  pos_ref: (3, J, TN)  halo_ref: (3, J, 128)
    # Lane axis = flattened batch*time (frame index n = b*T + t).
    px = pos_ref[0]                        # (J, TN)
    py = pos_ref[1]
    pz = pos_ref[2]
    jdim, tn = px.shape

    # ---- root rotation (y-only quaternion) ---------------------------------------------
    dx = px[5:6, :] - px[1:2, :]           # dir = pos[joint 5] - pos[joint 1]   (1, TN)
    dz = pz[5:6, :] - pz[1:2, :]
    vx = -dz                               # ref_vector = (-dir_z, 0, dir_x)
    vz = dx
    n2 = vx * vx + vz * vz
    # Guard padded lanes (n2 == 0) so no inf/NaN is produced; valid lanes are unchanged.
    inv_n = jax.lax.rsqrt(jnp.where(n2 > 0.0, n2, 1.0))
    ux = vx * inv_n
    uz = vz * inv_n
    qw = 1.0 + ux                          # from_to_1_0_0: q ~ (1+u_x, 0, u_z, -u_y), u_y = 0
    qy = uz
    inv_qn = jax.lax.rsqrt(qw * qw + qy * qy)
    rw = qw * inv_qn                       # (1, TN)
    ry = qy * inv_qn

    zero = jnp.zeros_like(rw)
    # Single lane-dense (4, TN) store instead of four 1-sublane stores.
    root_ref[...] = jnp.concatenate([rw, zero, ry, zero], axis=0)

    # y-only rotation coefficients; broadcast ONCE and reuse across all three sections.
    a1 = rw * rw - ry * ry                 # (1, TN)
    b1 = 2.0 * rw * ry
    a = jnp.broadcast_to(a1, (jdim, tn))
    b = jnp.broadcast_to(b1, (jdim, tn))
    rwj = jnp.broadcast_to(rw, (jdim, tn))
    ryj = jnp.broadcast_to(ry, (jdim, tn))

    # ---- glb_vel[t] = R(root[t]) @ (pos[t+1] - pos[t]) ----------------------------------
    # Next frame via lane roll (XLU); the block's last lane is patched from the halo
    # (first lane of the next block).  Lanes at batch boundaries / padding carry garbage
    # and are trimmed by the wrapper (vel keeps only T-1 frames per clip).
    halo = halo_ref[...]                   # (3, J, 128)
    lane = jax.lax.broadcasted_iota(jnp.int32, (jdim, tn), 1)
    is_last = lane == (tn - 1)
    nx = jnp.where(is_last, halo[0, :, 0:1], pltpu.roll(px, tn - 1, 1))
    ny = jnp.where(is_last, halo[1, :, 0:1], pltpu.roll(py, tn - 1, 1))
    nz = jnp.where(is_last, halo[2, :, 0:1], pltpu.roll(pz, tn - 1, 1))
    dpx = nx - px
    dpy = ny - py
    dpz = nz - pz
    vel_ref[0] = a * dpx + b * dpz
    vel_ref[1] = dpy
    vel_ref[2] = a * dpz - b * dpx

    # ---- glb_rot = standardize(root (x) glb_rot), root has x = z = 0 ---------------------
    gw = rot_ref[0]
    gx = rot_ref[1]
    gy = rot_ref[2]
    gz = rot_ref[3]
    ow = rwj * gw - ryj * gy
    ox = rwj * gx + ryj * gz
    oy = rwj * gy + ryj * gw
    oz = rwj * gz - ryj * gx
    sign = jnp.where(ow < 0.0, -1.0, 1.0)
    rot_out_ref[0] = ow * sign
    rot_out_ref[1] = ox * sign
    rot_out_ref[2] = oy * sign
    rot_out_ref[3] = oz * sign

    # ---- glb_pos: subtract root joint's x/z, then rotate --------------------------------
    cx = px - px[0:1, :]
    cz = pz - pz[0:1, :]
    pos_out_ref[0] = a * cx + b * cz
    pos_out_ref[1] = py
    pos_out_ref[2] = a * cz - b * cx


# ------------------------------------- wrapper -------------------------------------------

def _vmem_capacity_bytes():
    try:
        info = pltpu.get_tpu_info()
        cap = int(getattr(info, "vmem_capacity_bytes", 0) or 0)
        if cap > 0:
            return cap
    except Exception:
        pass
    return 64 * 1024 * 1024   # v7x per-TensorCore VMEM -- the smallest across generations


def batch_process_data_v2(glb_rot, glb_pos):
    """glb_rot: (B, T, J, 4) wxyz quaternions, glb_pos: (B, T, J, 3), float32.

    Returns (glb_vel (B,T-1,J,3), glb_pos (B,T,J,3), glb_rot (B,T,J,4),
             root_rotation (B,T,1,4)) -- same values/layout as the PyTorch module."""
    B, T, J, _ = glb_rot.shape
    N = B * T

    # Generation-aware VMEM budget.  ~40 MiB limit on v7x (64 MiB/TC), ~80 MiB on v5e/v6e.
    cap = _vmem_capacity_bytes()
    vmem_limit = min(cap * 5 // 8, 100 * 1024 * 1024)
    block_budget = vmem_limit // 2

    # f32 bytes per lane column: double-buffered in (7J) + out (10J + 4) planes, plus
    # ~12J planes of live elementwise temporaries (single-buffered).
    bytes_per_lane = (2 * (7 * J + 10 * J + 4) + 12 * J) * 4
    chunks = -(-N // _LANE)
    max_chunks = max(1, block_budget // (bytes_per_lane * _LANE))
    nblk = -(-chunks // max_chunks)
    cpb = -(-chunks // nblk)               # chunks per block, balanced -> minimal tail pad
    total_chunks = nblk * cpb
    npad = total_chunks * _LANE
    tn = cpb * _LANE

    # (B, T, J, C) -> (C, J, N).  Interface-imposed; see TODO(synk) at the top of the file.
    rot_cf = jnp.transpose(glb_rot.reshape(N, J, 4), (2, 1, 0))
    pos_cf = jnp.transpose(glb_pos.reshape(N, J, 3), (2, 1, 0))
    if npad != N:
        rot_cf = jnp.pad(rot_cf, ((0, 0), (0, 0), (0, npad - N)))
        pos_cf = jnp.pad(pos_cf, ((0, 0), (0, 0), (0, npad - N)))

    out_shape = (
        jax.ShapeDtypeStruct((3, J, npad), jnp.float32),   # glb_vel (trimmed below)
        jax.ShapeDtypeStruct((3, J, npad), jnp.float32),   # glb_pos
        jax.ShapeDtypeStruct((4, J, npad), jnp.float32),   # glb_rot
        jax.ShapeDtypeStruct((4, npad), jnp.float32),      # root_rotation
    )

    grid_spec = pltpu.PrefetchScalarGridSpec(
        num_scalar_prefetch=0,
        grid=(nblk,),
        in_specs=[
            pl.BlockSpec((4, J, tn), lambda i: (0, 0, i)),
            pl.BlockSpec((3, J, tn), lambda i: (0, 0, i)),
            # 128-lane halo: first chunk of the NEXT block (clamped for the last block).
            pl.BlockSpec((3, J, _LANE),
                         lambda i: (0, 0, jnp.minimum((i + 1) * cpb, total_chunks - 1))),
        ],
        out_specs=[
            pl.BlockSpec((3, J, tn), lambda i: (0, 0, i)),
            pl.BlockSpec((3, J, tn), lambda i: (0, 0, i)),
            pl.BlockSpec((4, J, tn), lambda i: (0, 0, i)),
            pl.BlockSpec((4, tn), lambda i: (0, i)),
        ],
    )

    vel, pos_o, rot_o, root = pl.pallas_call(
        _batch_process_kernel,
        out_shape=out_shape,
        grid_spec=grid_spec,
        compiler_params=pltpu.CompilerParams(
            dimension_semantics=("parallel",),
            vmem_limit_bytes=int(vmem_limit),
        ),
    )(rot_cf, pos_cf, pos_cf)

    # Back to the PyTorch layout (interface-imposed); trim padding and the extra vel frame.
    glb_vel = jnp.transpose(vel[:, :, :N], (2, 1, 0)).reshape(B, T, J, 3)[:, : T - 1]
    glb_pos_out = jnp.transpose(pos_o[:, :, :N], (2, 1, 0)).reshape(B, T, J, 3)
    glb_rot_out = jnp.transpose(rot_o[:, :, :N], (2, 1, 0)).reshape(B, T, J, 4)
    root_rotation = jnp.transpose(root[:, :N], (1, 0)).reshape(B, T, 1, 4)
    return glb_vel, glb_pos_out, glb_rot_out, root_rotation


# ----------------------------- pure-JAX reference (for checking) -------------------------

def _reference(glb_rot, glb_pos):
    def qmul(a, b):
        aw, ax, ay, az = a[..., 0], a[..., 1], a[..., 2], a[..., 3]
        bw, bx, by, bz = b[..., 0], b[..., 1], b[..., 2], b[..., 3]
        return jnp.stack([
            aw * bw - ax * bx - ay * by - az * bz,
            aw * bx + ax * bw + ay * bz - az * by,
            aw * by - ax * bz + ay * bw + az * bx,
            aw * bz + ax * by - ay * bx + az * bw,
        ], axis=-1)

    def qapply(q, p):
        pq = jnp.concatenate([jnp.zeros_like(p[..., :1]), p], axis=-1)
        conj = q * jnp.array([1.0, -1.0, -1.0, -1.0], dtype=q.dtype)
        return qmul(qmul(q, pq), conj)[..., 1:]

    dirv = glb_pos[..., 5:6, :] - glb_pos[..., 1:2, :]
    ref_vector = jnp.concatenate(
        (-dirv[..., 2:3], jnp.zeros_like(dirv[..., 1:2]), dirv[..., 0:1]), axis=-1)
    u = ref_vector * jax.lax.rsqrt(jnp.sum(ref_vector ** 2, -1, keepdims=True))
    q = jnp.concatenate([1.0 + u[..., 0:1], jnp.zeros_like(u[..., 0:1]),
                         u[..., 2:3], -u[..., 1:2]], axis=-1)
    root_rotation = q * jax.lax.rsqrt(jnp.sum(q ** 2, -1, keepdims=True))

    glb_vel = qapply(root_rotation[:, :-1], glb_pos[:, 1:] - glb_pos[:, :-1])
    grot = qmul(root_rotation, glb_rot)
    grot = jnp.where(grot[..., 0:1] < 0, -grot, grot)
    gp = glb_pos - glb_pos[..., 0:1, :] * jnp.array([1.0, 0.0, 1.0], glb_pos.dtype)
    gp = qapply(root_rotation, gp)
    return glb_vel, gp, grot, root_rotation


if __name__ == "__main__":
    key = jax.random.PRNGKey(0)
    k1, k2 = jax.random.split(key)
    B, T, J = 2, 8, 8          # batch, frames, joints (J >= 6 required by joints 1 & 5)

    glb_rot = jax.random.normal(k1, (B, T, J, 4), dtype=jnp.float32)
    glb_rot = glb_rot / jnp.linalg.norm(glb_rot, axis=-1, keepdims=True)
    glb_pos = jax.random.normal(k2, (B, T, J, 3), dtype=jnp.float32)

    outs = batch_process_data_v2(glb_rot, glb_pos)
    outs = jax.block_until_ready(outs)

    refs = _reference(glb_rot, glb_pos)
    names = ["glb_vel", "glb_pos", "glb_rot", "root_rotation"]
    for name, o, r in zip(names, outs, refs):
        assert o.shape == r.shape, (name, o.shape, r.shape)
        assert bool(jnp.all(jnp.isfinite(o))), name
        assert jnp.allclose(o, r, atol=1e-4, rtol=1e-3), name

    print("KERNEL_OK")
</pallas_src>

<mosaic_0001>
module attributes {stable_mosaic.version = 11 : i64} {
  func.func @_batch_process_kernel(%arg0: i32, %arg1: memref<4x8x128xf32, #tpu.memory_space<vmem>>, %arg2: memref<3x8x128xf32, #tpu.memory_space<vmem>>, %arg3: memref<3x8x128xf32, #tpu.memory_space<vmem>>, %arg4: memref<3x8x128xf32, #tpu.memory_space<vmem>>, %arg5: memref<3x8x128xf32, #tpu.memory_space<vmem>>, %arg6: memref<4x8x128xf32, #tpu.memory_space<vmem>>, %arg7: memref<4x128xf32, #tpu.memory_space<vmem>>) attributes {dimension_semantics = [#tpu.dimension_semantics<parallel>], iteration_bounds = array<i64: 1>, scalar_prefetch = 0 : i64, scratch_operands = 0 : i64, tpu.core_type = #tpu.core_type<tc>, window_params = [{transform_indices = @transform_0, window_bounds = array<i64: 4, 8, 128>}, {transform_indices = @transform_1, window_bounds = array<i64: 3, 8, 128>}, {transform_indices = @transform_2, window_bounds = array<i64: 3, 8, 128>}, {transform_indices = @transform_3, window_bounds = array<i64: 3, 8, 128>}, {transform_indices = @transform_4, window_bounds = array<i64: 3, 8, 128>}, {transform_indices = @transform_5, window_bounds = array<i64: 4, 8, 128>}, {transform_indices = @transform_6, window_bounds = array<i64: 4, 128>}]} {
    %c0 = arith.constant 0 : index
    %c0_0 = arith.constant 0 : index
    %c0_1 = arith.constant 0 : index
    %0 = vector.load %arg2[%c0, %c0_0, %c0_1] : memref<3x8x128xf32, #tpu.memory_space<vmem>>, vector<1x8x128xf32>
    %1 = vector.shape_cast %0 : vector<1x8x128xf32> to vector<8x128xf32>
    %c1 = arith.constant 1 : index
    %c0_2 = arith.constant 0 : index
    %c0_3 = arith.constant 0 : index
    %2 = vector.load %arg2[%c1, %c0_2, %c0_3] : memref<3x8x128xf32, #tpu.memory_space<vmem>>, vector<1x8x128xf32>
    %3 = vector.shape_cast %2 : vector<1x8x128xf32> to vector<8x128xf32>
    %c2 = arith.constant 2 : index
    %c0_4 = arith.constant 0 : index
    %c0_5 = arith.constant 0 : index
    %4 = vector.load %arg2[%c2, %c0_4, %c0_5] : memref<3x8x128xf32, #tpu.memory_space<vmem>>, vector<1x8x128xf32>
    %5 = vector.shape_cast %4 : vector<1x8x128xf32> to vector<8x128xf32>
    %6 = vector.extract_strided_slice %1 {offsets = [5, 0], sizes = [1, 128], strides = [1, 1]} : vector<8x128xf32> to vector<1x128xf32>
    %7 = vector.extract_strided_slice %1 {offsets = [1, 0], sizes = [1, 128], strides = [1, 1]} : vector<8x128xf32> to vector<1x128xf32>
    %8 = arith.subf %6, %7 : vector<1x128xf32>
    %9 = vector.extract_strided_slice %5 {offsets = [5, 0], sizes = [1, 128], strides = [1, 1]} : vector<8x128xf32> to vector<1x128xf32>
    %10 = vector.extract_strided_slice %5 {offsets = [1, 0], sizes = [1, 128], strides = [1, 1]} : vector<8x128xf32> to vector<1x128xf32>
    %11 = arith.subf %9, %10 : vector<1x128xf32>
    %cst = arith.constant 0.000000e+00 : f32
    %12 = vector.broadcast %cst : f32 to vector<1x128xf32>
    %13 = arith.subf %12, %11 : vector<1x128xf32>
    %14 = arith.mulf %13, %13 : vector<1x128xf32>
    %15 = arith.mulf %8, %8 : vector<1x128xf32>
    %16 = arith.addf %14, %15 : vector<1x128xf32>
    %cst_6 = arith.constant 0.000000e+00 : f32
    %17 = vector.broadcast %cst_6 : f32 to vector<1x128xf32>
    %18 = arith.cmpf ogt, %16, %17 : vector<1x128xf32>
    %cst_7 = arith.constant 1.000000e+00 : f32
    %19 = vector.broadcast %cst_7 : f32 to vector<1x128xf32>
    %20 = arith.select %18, %16, %19 : vector<1x128xi1>, vector<1x128xf32>
    %21 = math.rsqrt %20 : vector<1x128xf32>
    %22 = arith.mulf %13, %21 : vector<1x128xf32>
    %23 = arith.mulf %8, %21 : vector<1x128xf32>
    %cst_8 = arith.constant 1.000000e+00 : f32
    %24 = vector.broadcast %cst_8 : f32 to vector<1x128xf32>
    %25 = arith.addf %24, %22 : vector<1x128xf32>
    %26 = arith.mulf %25, %25 : vector<1x128xf32>
    %27 = arith.mulf %23, %23 : vector<1x128xf32>
    %28 = arith.addf %26, %27 : vector<1x128xf32>
    %29 = math.rsqrt %28 : vector<1x128xf32>
    %30 = arith.mulf %25, %29 : vector<1x128xf32>
    %31 = arith.mulf %23, %29 : vector<1x128xf32>
    %cst_9 = arith.constant 0.000000e+00 : f32
    %32 = vector.broadcast %cst_9 : f32 to vector<1x128xf32>
    %33 = tpu.concatenate %30, %32, %31, %32 in 0 : vector<1x128xf32>, vector<1x128xf32>, vector<1x128xf32>, vector<1x128xf32> -> vector<4x128xf32>
    %c0_10 = arith.constant 0 : index
    %c0_11 = arith.constant 0 : index
    %34 = vector.load %arg7[%c0_10, %c0_11] : memref<4x128xf32, #tpu.memory_space<vmem>>, vector<4x128xf32>
    tpu.vector_store %arg7[%c0_10, %c0_11], %33 {strides = array<i32>} : memref<4x128xf32, #tpu.memory_space<vmem>>, vector<4x128xf32>,
    %35 = arith.mulf %30, %30 : vector<1x128xf32>
    %36 = arith.mulf %31, %31 : vector<1x128xf32>
    %37 = arith.subf %35, %36 : vector<1x128xf32>
    %cst_12 = arith.constant 2.000000e+00 : f32
    %38 = vector.broadcast %cst_12 : f32 to vector<1x128xf32>
    %39 = arith.mulf %38, %30 : vector<1x128xf32>
    %40 = arith.mulf %39, %31 : vector<1x128xf32>
    %41 = vector.shape_cast %37 : vector<1x128xf32> to vector<1x128xf32>
    %42 = vector.broadcast %41 : vector<1x128xf32> to vector<8x128xf32>
    %43 = vector.shape_cast %40 : vector<1x128xf32> to vector<1x128xf32>
    %44 = vector.broadcast %43 : vector<1x128xf32> to vector<8x128xf32>
    %45 = vector.shape_cast %30 : vector<1x128xf32> to vector<1x128xf32>
    %46 = vector.broadcast %45 : vector<1x128xf32> to vector<8x128xf32>
    %47 = vector.shape_cast %31 : vector<1x128xf32> to vector<1x128xf32>
    %48 = vector.broadcast %47 : vector<1x128xf32> to vector<8x128xf32>
    %c0_13 = arith.constant 0 : index
    %c0_14 = arith.constant 0 : index
    %c0_15 = arith.constant 0 : index
    %49 = vector.load %arg3[%c0_13, %c0_14, %c0_15] : memref<3x8x128xf32, #tpu.memory_space<vmem>>, vector<3x8x128xf32>
    %50 = tpu.iota {dimensions = array<i32: 1>} : vector<8x128xi32>
    %c127_i32 = arith.constant 127 : i32
    %51 = vector.broadcast %c127_i32 : i32 to vector<8x128xi32>
    %52 = arith.cmpi eq, %50, %51 : vector<8x128xi32>
    %53 = vector.extract_strided_slice %49 {offsets = [0, 0, 0], sizes = [1, 8, 1], strides = [1, 1, 1]} : vector<3x8x128xf32> to vector<1x8x1xf32>
    %54 = vector.shape_cast %53 : vector<1x8x1xf32> to vector<8x1xf32>
    %c127_i32_16 = arith.constant 127 : i32
    %55 = tpu.dynamic_rotate %1 by %c127_i32_16 dim 1 : vector<8x128xf32>, i32 -> vector<8x128xf32>
    %56 = vector.shape_cast %54 : vector<8x1xf32> to vector<8x1xf32>
    %57 = vector.broadcast %56 : vector<8x1xf32> to vector<8x128xf32>
    %58 = arith.select %52, %57, %55 : vector<8x128xi1>, vector<8x128xf32>
    %59 = vector.extract_strided_slice %49 {offsets = [1, 0, 0], sizes = [1, 8, 1], strides = [1, 1, 1]} : vector<3x8x128xf32> to vector<1x8x1xf32>
    %60 = vector.shape_cast %59 : vector<1x8x1xf32> to vector<8x1xf32>
    %c127_i32_17 = arith.constant 127 : i32
    %61 = tpu.dynamic_rotate %3 by %c127_i32_17 dim 1 : vector<8x128xf32>, i32 -> vector<8x128xf32>
    %62 = vector.shape_cast %60 : vector<8x1xf32> to vector<8x1xf32>
    %63 = vector.broadcast %62 : vector<8x1xf32> to vector<8x128xf32>
    %64 = arith.select %52, %63, %61 : vector<8x128xi1>, vector<8x128xf32>
    %65 = vector.extract_strided_slice %49 {offsets = [2, 0, 0], sizes = [1, 8, 1], strides = [1, 1, 1]} : vector<3x8x128xf32> to vector<1x8x1xf32>
    %66 = vector.shape_cast %65 : vector<1x8x1xf32> to vector<8x1xf32>
    %c127_i32_18 = arith.constant 127 : i32
    %67 = tpu.dynamic_rotate %5 by %c127_i32_18 dim 1 : vector<8x128xf32>, i32 -> vector<8x128xf32>
    %68 = vector.shape_cast %66 : vector<8x1xf32> to vector<8x1xf32>
    %69 = vector.broadcast %68 : vector<8x1xf32> to vector<8x128xf32>
    %70 = arith.select %52, %69, %67 : vector<8x128xi1>, vector<8x128xf32>
    %71 = arith.subf %58, %1 : vector<8x128xf32>
    %72 = arith.subf %64, %3 : vector<8x128xf32>
    %73 = arith.subf %70, %5 : vector<8x128xf32>
    %74 = arith.mulf %42, %71 : vector<8x128xf32>
    %75 = arith.mulf %44, %73 : vector<8x128xf32>
    %76 = arith.addf %74, %75 : vector<8x128xf32>
    %c0_19 = arith.constant 0 : index
    %c0_20 = arith.constant 0 : index
    %c0_21 = arith.constant 0 : index
    %77 = vector.load %arg4[%c0_19, %c0_20, %c0_21] : memref<3x8x128xf32, #tpu.memory_space<vmem>>, vector<1x8x128xf32>
    %78 = vector.shape_cast %77 : vector<1x8x128xf32> to vector<8x128xf32>
    %79 = vector.shape_cast %76 : vector<8x128xf32> to vector<1x8x128xf32>
    tpu.vector_store %arg4[%c0_19, %c0_20, %c0_21], %79 {strides = array<i32>} : memref<3x8x128xf32, #tpu.memory_space<vmem>>, vector<1x8x128xf32>,
    %c1_22 = arith.constant 1 : index
    %c0_23 = arith.constant 0 : index
    %c0_24 = arith.constant 0 : index
    %80 = vector.load %arg4[%c1_22, %c0_23, %c0_24] : memref<3x8x128xf32, #tpu.memory_space<vmem>>, vector<1x8x128xf32>
    %81 = vector.shape_cast %80 : vector<1x8x128xf32> to vector<8x128xf32>
    %82 = vector.shape_cast %72 : vector<8x128xf32> to vector<1x8x128xf32>
    tpu.vector_store %arg4[%c1_22, %c0_23, %c0_24], %82 {strides = array<i32>} : memref<3x8x128xf32, #tpu.memory_space<vmem>>, vector<1x8x128xf32>,
    %83 = arith.mulf %42, %73 : vector<8x128xf32>
    %84 = arith.mulf %44, %71 : vector<8x128xf32>
    %85 = arith.subf %83, %84 : vector<8x128xf32>
    %c2_25 = arith.constant 2 : index
    %c0_26 = arith.constant 0 : index
    %c0_27 = arith.constant 0 : index
    %86 = vector.load %arg4[%c2_25, %c0_26, %c0_27] : memref<3x8x128xf32, #tpu.memory_space<vmem>>, vector<1x8x128xf32>
    %87 = vector.shape_cast %86 : vector<1x8x128xf32> to vector<8x128xf32>
    %88 = vector.shape_cast %85 : vector<8x128xf32> to vector<1x8x128xf32>
    tpu.vector_store %arg4[%c2_25, %c0_26, %c0_27], %88 {strides = array<i32>} : memref<3x8x128xf32, #tpu.memory_space<vmem>>, vector<1x8x128xf32>,
    %c0_28 = arith.constant 0 : index
    %c0_29 = arith.constant 0 : index
    %c0_30 = arith.constant 0 : index
    %89 = vector.load %arg1[%c0_28, %c0_29, %c0_30] : memref<4x8x128xf32, #tpu.memory_space<vmem>>, vector<1x8x128xf32>
    %90 = vector.shape_cast %89 : vector<1x8x128xf32> to vector<8x128xf32>
    %c1_31 = arith.constant 1 : index
    %c0_32 = arith.constant 0 : index
    %c0_33 = arith.constant 0 : index
    %91 = vector.load %arg1[%c1_31, %c0_32, %c0_33] : memref<4x8x128xf32, #tpu.memory_space<vmem>>, vector<1x8x128xf32>
    %92 = vector.shape_cast %91 : vector<1x8x128xf32> to vector<8x128xf32>
    %c2_34 = arith.constant 2 : index
    %c0_35 = arith.constant 0 : index
    %c0_36 = arith.constant 0 : index
    %93 = vector.load %arg1[%c2_34, %c0_35, %c0_36] : memref<4x8x128xf32, #tpu.memory_space<vmem>>, vector<1x8x128xf32>
    %94 = vector.shape_cast %93 : vector<1x8x128xf32> to vector<8x128xf32>
    %c3 = arith.constant 3 : index
    %c0_37 = arith.constant 0 : index
    %c0_38 = arith.constant 0 : index
    %95 = vector.load %arg1[%c3, %c0_37, %c0_38] : memref<4x8x128xf32, #tpu.memory_space<vmem>>, vector<1x8x128xf32>
    %96 = vector.shape_cast %95 : vector<1x8x128xf32> to vector<8x128xf32>
    %97 = arith.mulf %46, %90 : vector<8x128xf32>
    %98 = arith.mulf %48, %94 : vector<8x128xf32>
    %99 = arith.subf %97, %98 : vector<8x128xf32>
    %100 = arith.mulf %46, %92 : vector<8x128xf32>
    %101 = arith.mulf %48, %96 : vector<8x128xf32>
    %102 = arith.addf %100, %101 : vector<8x128xf32>
    %103 = arith.mulf %46, %94 : vector<8x128xf32>
    %104 = arith.mulf %48, %90 : vector<8x128xf32>
    %105 = arith.addf %103, %104 : vector<8x128xf32>
    %106 = arith.mulf %46, %96 : vector<8x128xf32>
    %107 = arith.mulf %48, %92 : vector<8x128xf32>
    %108 = arith.subf %106, %107 : vector<8x128xf32>
    %cst_39 = arith.constant 0.000000e+00 : f32
    %109 = vector.broadcast %cst_39 : f32 to vector<8x128xf32>
    %110 = arith.cmpf olt, %99, %109 : vector<8x128xf32>
    %cst_40 = arith.constant -1.000000e+00 : f32
    %cst_41 = arith.constant 1.000000e+00 : f32
    %111 = vector.broadcast %cst_40 : f32 to vector<8x128xf32>
    %112 = vector.broadcast %cst_41 : f32 to vector<8x128xf32>
    %113 = arith.select %110, %111, %112 : vector<8x128xi1>, vector<8x128xf32>
    %114 = arith.mulf %99, %113 : vector<8x128xf32>
    %c0_42 = arith.constant 0 : index
    %c0_43 = arith.constant 0 : index
    %c0_44 = arith.constant 0 : index
    %115 = vector.load %arg6[%c0_42, %c0_43, %c0_44] : memref<4x8x128xf32, #tpu.memory_space<vmem>>, vector<1x8x128xf32>
    %116 = vector.shape_cast %115 : vector<1x8x128xf32> to vector<8x128xf32>
    %117 = vector.shape_cast %114 : vector<8x128xf32> to vector<1x8x128xf32>
    tpu.vector_store %arg6[%c0_42, %c0_43, %c0_44], %117 {strides = array<i32>} : memref<4x8x128xf32, #tpu.memory_space<vmem>>, vector<1x8x128xf32>,
    %118 = arith.mulf %102, %113 : vector<8x128xf32>
    %c1_45 = arith.constant 1 : index
    %c0_46 = arith.constant 0 : index
    %c0_47 = arith.constant 0 : index
    %119 = vector.load %arg6[%c1_45, %c0_46, %c0_47] : memref<4x8x128xf32, #tpu.memory_space<vmem>>, vector<1x8x128xf32>
    %120 = vector.shape_cast %119 : vector<1x8x128xf32> to vector<8x128xf32>
    %121 = vector.shape_cast %118 : vector<8x128xf32> to vector<1x8x128xf32>
    tpu.vector_store %arg6[%c1_45, %c0_46, %c0_47], %121 {strides = array<i32>} : memref<4x8x128xf32, #tpu.memory_space<vmem>>, vector<1x8x128xf32>,
    %122 = arith.mulf %105, %113 : vector<8x128xf32>
    %c2_48 = arith.constant 2 : index
    %c0_49 = arith.constant 0 : index
    %c0_50 = arith.constant 0 : index
    %123 = vector.load %arg6[%c2_48, %c0_49, %c0_50] : memref<4x8x128xf32, #tpu.memory_space<vmem>>, vector<1x8x128xf32>
    %124 = vector.shape_cast %123 : vector<1x8x128xf32> to vector<8x128xf32>
    %125 = vector.shape_cast %122 : vector<8x128xf32> to vector<1x8x128xf32>
    tpu.vector_store %arg6[%c2_48, %c0_49, %c0_50], %125 {strides = array<i32>} : memref<4x8x128xf32, #tpu.memory_space<vmem>>, vector<1x8x128xf32>,
    %126 = arith.mulf %108, %113 : vector<8x128xf32>
    %c3_51 = arith.constant 3 : index
    %c0_52 = arith.constant 0 : index
    %c0_53 = arith.constant 0 : index
    %127 = vector.load %arg6[%c3_51, %c0_52, %c0_53] : memref<4x8x128xf32, #tpu.memory_space<vmem>>, vector<1x8x128xf32>
    %128 = vector.shape_cast %127 : vector<1x8x128xf32> to vector<8x128xf32>
    %129 = vector.shape_cast %126 : vector<8x128xf32> to vector<1x8x128xf32>
    tpu.vector_store %arg6[%c3_51, %c0_52, %c0_53], %129 {strides = array<i32>} : memref<4x8x128xf32, #tpu.memory_space<vmem>>, vector<1x8x128xf32>,
    %130 = vector.extract_strided_slice %1 {offsets = [0, 0], sizes = [1, 128], strides = [1, 1]} : vector<8x128xf32> to vector<1x128xf32>
    %131 = vector.broadcast %130 : vector<1x128xf32> to vector<8x128xf32>
    %132 = arith.subf %1, %131 : vector<8x128xf32>
    %133 = vector.extract_strided_slice %5 {offsets = [0, 0], sizes = [1, 128], strides = [1, 1]} : vector<8x128xf32> to vector<1x128xf32>
    %134 = vector.broadcast %133 : vector<1x128xf32> to vector<8x128xf32>
    %135 = arith.subf %5, %134 : vector<8x128xf32>
    %136 = arith.mulf %42, %132 : vector<8x128xf32>
    %137 = arith.mulf %44, %135 : vector<8x128xf32>
    %138 = arith.addf %136, %137 : vector<8x128xf32>
    %c0_54 = arith.constant 0 : index
    %c0_55 = arith.constant 0 : index
    %c0_56 = arith.constant 0 : index
    %139 = vector.load %arg5[%c0_54, %c0_55, %c0_56] : memref<3x8x128xf32, #tpu.memory_space<vmem>>, vector<1x8x128xf32>
    %140 = vector.shape_cast %139 : vector<1x8x128xf32> to vector<8x128xf32>
    %141 = vector.shape_cast %138 : vector<8x128xf32> to vector<1x8x128xf32>
    tpu.vector_store %arg5[%c0_54, %c0_55, %c0_56], %141 {strides = array<i32>} : memref<3x8x128xf32, #tpu.memory_space<vmem>>, vector<1x8x128xf32>,
    %c1_57 = arith.constant 1 : index
    %c0_58 = arith.constant 0 : index
    %c0_59 = arith.constant 0 : index
    %142 = vector.load %arg5[%c1_57, %c0_58, %c0_59] : memref<3x8x128xf32, #tpu.memory_space<vmem>>, vector<1x8x128xf32>
    %143 = vector.shape_cast %142 : vector<1x8x128xf32> to vector<8x128xf32>
    %144 = vector.shape_cast %3 : vector<8x128xf32> to vector<1x8x128xf32>
    tpu.vector_store %arg5[%c1_57, %c0_58, %c0_59], %144 {strides = array<i32>} : memref<3x8x128xf32, #tpu.memory_space<vmem>>, vector<1x8x128xf32>,
    %145 = arith.mulf %42, %135 : vector<8x128xf32>
    %146 = arith.mulf %44, %132 : vector<8x128xf32>
    %147 = arith.subf %145, %146 : vector<8x128xf32>
    %c2_60 = arith.constant 2 : index
    %c0_61 = arith.constant 0 : index
    %c0_62 = arith.constant 0 : index
    %148 = vector.load %arg5[%c2_60, %c0_61, %c0_62] : memref<3x8x128xf32, #tpu.memory_space<vmem>>, vector<1x8x128xf32>
    %149 = vector.shape_cast %148 : vector<1x8x128xf32> to vector<8x128xf32>
    %150 = vector.shape_cast %147 : vector<8x128xf32> to vector<1x8x128xf32>
    tpu.vector_store %arg5[%c2_60, %c0_61, %c0_62], %150 {strides = array<i32>} : memref<3x8x128xf32, #tpu.memory_space<vmem>>, vector<1x8x128xf32>,
    return
  }
  func.func @transform_0(%arg0: i32) -> (i32, i32, i32) {
    %c0_i32 = arith.constant 0 : i32
    %c0_i32_0 = arith.constant 0 : i32
    %c0_i32_1 = arith.constant 0 : i32
    return %c0_i32, %c0_i32_0, %arg0 : i32, i32, i32
  }
  func.func @transform_1(%arg0: i32) -> (i32, i32, i32) {
    %c0_i32 = arith.constant 0 : i32
    %c0_i32_0 = arith.constant 0 : i32
    %c0_i32_1 = arith.constant 0 : i32
    return %c0_i32, %c0_i32_0, %arg0 : i32, i32, i32
  }
  func.func @transform_2(%arg0: i32) -> (i32, i32, i32) {
    %c1_i32 = arith.constant 1 : i32
    %0 = arith.addi %arg0, %c1_i32 : i32
    %c1_i32_0 = arith.constant 1 : i32
    %1 = arith.muli %0, %c1_i32_0 : i32
    %c0_i32 = arith.constant 0 : i32
    %2 = arith.minsi %1, %c0_i32 : i32
    %c0_i32_1 = arith.constant 0 : i32
    %c0_i32_2 = arith.constant 0 : i32
    %c0_i32_3 = arith.constant 0 : i32
    return %c0_i32_1, %c0_i32_2, %2 : i32, i32, i32
  }
  func.func @transform_3(%arg0: i32) -> (i32, i32, i32) {
    %c0_i32 = arith.constant 0 : i32
    %c0_i32_0 = arith.constant 0 : i32
    %c0_i32_1 = arith.constant 0 : i32
    return %c0_i32, %c0_i32_0, %arg0 : i32, i32, i32
  }
  func.func @transform_4(%arg0: i32) -> (i32, i32, i32) {
    %c0_i32 = arith.constant 0 : i32
    %c0_i32_0 = arith.constant 0 : i32
    %c0_i32_1 = arith.constant 0 : i32
    return %c0_i32, %c0_i32_0, %arg0 : i32, i32, i32
  }
  func.func @transform_5(%arg0: i32) -> (i32, i32, i32) {
    %c0_i32 = arith.constant 0 : i32
    %c0_i32_0 = arith.constant 0 : i32
    %c0_i32_1 = arith.constant 0 : i32
    return %c0_i32, %c0_i32_0, %arg0 : i32, i32, i32
  }
  func.func @transform_6(%arg0: i32) -> (i32, i32) {
    %c0_i32 = arith.constant 0 : i32
    %c0_i32_0 = arith.constant 0 : i32
    return %c0_i32, %arg0 : i32, i32
  }
}

</mosaic_0001>

<llo_original>
// kernel: tpu_custom_call.1
$region0: #{tpu_custom_call.1}
  #allocation0 [shape = 'u32[]', space=smem, size = 0x4, offset = 0x4, fixed_abs, tag = 'smem constant byte address 0x4 - core index']
  #allocation1 [shape = 'u32[144,128]{1,0:T(1,128)}', space=vmem, size = 0x12000, scoped, tag = 'internal scratch']
  %s0 = inlined_call_operand.hbm [shape: f32[4,8,128], index: 0, kind: input, shape index: {}]
  %s1 = inlined_call_operand.hbm [shape: f32[3,8,128], index: 1, kind: input, shape index: {}]
  %s2 = inlined_call_operand.hbm [shape: f32[3,8,128], index: 2, kind: input, shape index: {}]
  %s3 = inlined_call_operand.hbm [shape: f32[3,8,128], index: 3, kind: output, shape index: {0}]
  %s4 = inlined_call_operand.hbm [shape: f32[3,8,128], index: 4, kind: output, shape index: {1}]
  %s5 = inlined_call_operand.hbm [shape: f32[4,8,128], index: 5, kind: output, shape index: {2}]
  %s6 = inlined_call_operand.hbm [shape: f32[4,128], index: 6, kind: output, shape index: {3}]
  %7 = xla_tuple %s3, %s4, %s5, %s6
  %s8 = sld [smem:[#allocation0]]
  $region58: #{tpu_custom_call.1} parent=0
    _
  %s10 = ssub.s32 1, %s8
  %s11 = scalar_select 0, %s10, %s8
  $region1: #{tpu_custom_call.1} parent=0
    #allocation2 [shape = 'u8[16384]{0}', space=vmem, size = 0x4000, scoped, tag = 'input window, operand 0, single buffered']
    #allocation3 [shape = 's32[1]{0}', space=sflag, size = 0x4, scoped, tag = 'scoped memory for tpu_custom_call.1']
    #allocation4 [shape = 's32[1]{0}', space=sflag, size = 0x4, scoped, tag = 'scoped memory for tpu_custom_call.1']
    #allocation5 [shape = 'u8[12288]{0}', space=vmem, size = 0x3000, scoped, tag = 'input window, operand 1, single buffered']
    #allocation6 [shape = 's32[1]{0}', space=sflag, size = 0x4, scoped, tag = 'scoped memory for tpu_custom_call.1']
    #allocation7 [shape = 'u8[12288]{0}', space=vmem, size = 0x3000, scoped, tag = 'input window, operand 2, single buffered']
    #allocation8 [shape = 'u8[12288]{0}', space=vmem, size = 0x3000, scoped, tag = 'output window, operand 0, single buffered']
    #allocation9 [shape = 'u8[12288]{0}', space=vmem, size = 0x3000, scoped, tag = 'output window, operand 1, single buffered']
    #allocation10 [shape = 's32[1]{0}', space=sflag, size = 0x4, scoped, tag = 'scoped memory for tpu_custom_call.1']
    #allocation11 [shape = 'u8[16384]{0}', space=vmem, size = 0x4000, scoped, tag = 'output window, operand 2, single buffered']
    #allocation12 [shape = 'u8[2048]{0}', space=vmem, size = 0x800, scoped, tag = 'output window, operand 3, single buffered']
    #allocation13 [shape = 's32[1]{0}', space=sflag, size = 0x4, scoped, tag = 'scoped memory for tpu_custom_call.1']
    %12 = vsyncpa [#allocation3], 0
    %13 = vsyncpa [#allocation6], 0
    %14 = vsyncpa [#allocation4], 0
    %15 = vsyncpa [#allocation10], 0
    %16 = vsyncpa [#allocation13], 0
    // Predicated region
    $region2: #{tpu_custom_call.1} parent=1 // pred_check
      _
    $region3: #{tpu_custom_call.1} parent=1 // pred_check_branch
      %18 = sbr.rel (0) target = $region5
    $region4: #{tpu_custom_call.1} parent=1 // pred_region
      %s20 = ssub.s32 512, 512
      %21 = vsyncadd [#allocation3], %s20
      %s22 = sshll.u32 [#allocation2], 4
      %s23 = int_to_ptr.vmem [resolvable:$true] %s22
      %28 = dma.hbm_to_vmem [thread:$0]  %s0, 512, %s23, [#allocation3], 128, 128, 8
    $region5: #{tpu_custom_call.1} parent=1 // pred_fallthru
      _
    // Predicated region
    $region6: #{tpu_custom_call.1} parent=1 // pred_check
      _
    $region7: #{tpu_custom_call.1} parent=1 // pred_check_branch
      %30 = sbr.rel (0) target = $region9
    $region8: #{tpu_custom_call.1} parent=1 // pred_region
      %s32 = ssub.s32 384, 384
      %33 = vsyncadd [#allocation6], %s32
      %s34 = sshll.u32 [#allocation5], 4
      %s35 = int_to_ptr.vmem [resolvable:$true] %s34
      %40 = dma.hbm_to_vmem [thread:$0]  %s1, 384, %s35, [#allocation6], 128, 128, 8
    $region9: #{tpu_custom_call.1} parent=1 // pred_fallthru
      _
    // Predicated region
    $region10: #{tpu_custom_call.1} parent=1 // pred_check
      _
    $region11: #{tpu_custom_call.1} parent=1 // pred_check_branch
      %42 = sbr.rel (0) target = $region13
    $region12: #{tpu_custom_call.1} parent=1 // pred_region
      %s43 = sadd.s32 0, 1
      %p44 = scmp.lt.s32.totalorder %s43, 0
      %s45 = scalar_select %p44, %s43, 0
      %s47 = ssub.s32 384, 384
      %48 = vsyncadd [#allocation6], %s47
      %s49 = smul.addr %s45, 128
      %s50 = scalar_lea.hbm %s2, %s49
      %s51 = sshll.u32 [#allocation7], 4
      %s52 = int_to_ptr.vmem [resolvable:$true] %s51
      %57 = dma.hbm_to_vmem [thread:$0]  %s50, 384, %s52, [#allocation6], 128, 128, 8
    $region13: #{tpu_custom_call.1} parent=1 // pred_fallthru
      _
    // Predicated region
    $region14: #{tpu_custom_call.1} parent=1 // pred_check
      _
    $region15: #{tpu_custom_call.1} parent=1 // pred_check_branch
      %59 = sbr.rel (0) target = $region17
    $region16: #{tpu_custom_call.1} parent=1 // pred_region
      %60 = dma.done [#allocation3], 512
    $region17: #{tpu_custom_call.1} parent=1 // pred_fallthru
      _
    // Predicated region
    $region18: #{tpu_custom_call.1} parent=1 // pred_check
      _
    $region19: #{tpu_custom_call.1} parent=1 // pred_check_branch
      %62 = sbr.rel (0) target = $region21
    $region20: #{tpu_custom_call.1} parent=1 // pred_region
      %63 = dma.done [#allocation6], 384
    $region21: #{tpu_custom_call.1} parent=1 // pred_fallthru
      _
    // Predicated region
    $region22: #{tpu_custom_call.1} parent=1 // pred_check
      _
    $region23: #{tpu_custom_call.1} parent=1 // pred_check_branch
      %65 = sbr.rel (0) target = $region25
    $region24: #{tpu_custom_call.1} parent=1 // pred_region
      %66 = dma.done [#allocation6], 384
    $region25: #{tpu_custom_call.1} parent=1 // pred_fallthru
      _
    %s67 = sadd.s32 0, 1
    %p68 = scmp.lt.s32.totalorder %s67, 0
    %s69 = scalar_select %p68, %s67, 0
    %v70 = vld [vmem:[#allocation5] sm:$0xff]
    %s71 = scalar_lea.vmem [#allocation5], 8
    %v72 = vld [vmem:[%s71] sm:$0xff]
    %s73 = scalar_lea.vmem [#allocation5], 16
    %v74 = vld [vmem:[%s73] sm:$0xff]
    %v76 = vrot.slane %v70, 4
    %v78 = vsub.f32 %v70, %v76
    %v80 = vrot.slane %v74, 4
    %v82 = vsub.f32 %v74, %v80
    %v83 = vsub.f32 0.0, %v82
    %v84 = vmul.f32 %v83, %v83
    %v85 = vmul.f32 %v78, %v78
    %v86 = vadd.f32 %v84, %v85
    %vm87 = vcmp.gt.f32.partialorder %v86, 0.0
    %v88 = vsel %vm87, %v86, 1.0
    %v89 = vrsqrt.pop %v88
    %v90 = vmul.f32 %v83, %v89
    %v91 = vmul.f32 %v78, %v89
    %v92 = vadd.f32 %v90, 1.0
    %v93 = vmul.f32 %v92, %v92
    %v94 = vmul.f32 %v91, %v91
    %v95 = vadd.f32 %v93, %v94
    %v96 = vrsqrt.pop %v95
    %v97 = vmul.f32 %v92, %v96
    %v98 = vmul.f32 %v91, %v96
    %v100 = vrot.slane %v97, 5
    %v103 = vrot.slane %v98, 3
    %vm105 = vcmask 1040384
    %v106 = vsel %vm105, %v100, 0.0
    %vm107 = vcmask 1041408
    %v108 = vsel %vm107, %v106, %v103
    %vm109 = vcmask 1042432
    %v110 = vsel %vm109, %v108, 0.0
    %111 = vst [vmem:[#allocation12] sm:$0xf] %v110
    %v112 = vmul.f32 %v97, %v97
    %v113 = vmul.f32 %v98, %v98
    %v114 = vsub.f32 %v112, %v113
    %v115 = vmul.f32 %v97, 2.0
    %v116 = vmul.f32 %v115, %v98
    %v117 = vlaneseq
    %v118 = vshrl.u32 %v117, 7
    %v119 = vsub.s32 5, %v118
    %v120 = vrot.slane %v114, %v119
    %v121 = vlaneseq
    %v122 = vshrl.u32 %v121, 7
    %v123 = vsub.s32 5, %v122
    %v124 = vrot.slane %v116, %v123
    %v125 = vlaneseq
    %v126 = vshrl.u32 %v125, 7
    %v127 = vsub.s32 5, %v126
    %v128 = vrot.slane %v97, %v127
    %v129 = vlaneseq
    %v130 = vshrl.u32 %v129, 7
    %v131 = vsub.s32 5, %v130
    %v132 = vrot.slane %v98, %v131
    %v133 = vld [vmem:[#allocation7] sm:$0xff]
    %v134 = vld [vmem:[#allocation7 + $0x8] sm:$0xff]
    %v135 = vld [vmem:[#allocation7 + $0x10] sm:$0xff]
    %v136 = vlaneseq
    %v137 = vand.u32 %v136, 127
    %vm138 = vcmp.eq.s32.totalorder %v137, 127
    %139 = vrot.lane.b32.xlu0 %v70, 127
    %v140 = vpop.permute.xlu0 %139
    %142 = vset.pattern.permute.xlu0 0
    %143 = vperm.xlu0 %142, %v133
    %v144 = vpop.permute.xlu0 %143
    %v146 = vsel %vm138, %v144, %v140
    %147 = vrot.lane.b32.xlu0 %v72, 127
    %v148 = vpop.permute.xlu0 %147
    %150 = vset.pattern.permute.xlu0 0
    %151 = vperm.xlu0 %150, %v134
    %v152 = vpop.permute.xlu0 %151
    %v154 = vsel %vm138, %v152, %v148
    %155 = vrot.lane.b32.xlu0 %v74, 127
    %v156 = vpop.permute.xlu0 %155
    %158 = vset.pattern.permute.xlu0 0
    %159 = vperm.xlu0 %158, %v135
    %v160 = vpop.permute.xlu0 %159
    %v162 = vsel %vm138, %v160, %v156
    %v163 = vsub.f32 %v146, %v70
    %v164 = vsub.f32 %v154, %v72
    %v165 = vsub.f32 %v162, %v74
    %v166 = vmul.f32 %v120, %v163
    %v167 = vmul.f32 %v124, %v165
    %v168 = vadd.f32 %v166, %v167
    %169 = vst [vmem:[#allocation8] sm:$0xff] %v168
    %s170 = scalar_lea.vmem [#allocation8], 8
    %171 = vst [vmem:[%s170] sm:$0xff] %v164
    %v172 = vmul.f32 %v120, %v165
    %v173 = vmul.f32 %v124, %v163
    %v174 = vsub.f32 %v172, %v173
    %s175 = scalar_lea.vmem [#allocation8], 16
    %176 = vst [vmem:[%s175] sm:$0xff] %v174
    %v177 = vld [vmem:[#allocation2] sm:$0xff]
    %s178 = scalar_lea.vmem [#allocation2], 8
    %v179 = vld [vmem:[%s178] sm:$0xff]
    %s180 = scalar_lea.vmem [#allocation2], 16
    %v181 = vld [vmem:[%s180] sm:$0xff]
    %s182 = scalar_lea.vmem [#allocation2], 24
    %v183 = vld [vmem:[%s182] sm:$0xff]
    %v184 = vmul.f32 %v128, %v177
    %v185 = vmul.f32 %v132, %v181
    %v186 = vsub.f32 %v184, %v185
    %v187 = vmul.f32 %v128, %v179
    %v188 = vmul.f32 %v132, %v183
    %v189 = vadd.f32 %v187, %v188
    %v190 = vmul.f32 %v128, %v181
    %v191 = vmul.f32 %v132, %v177
    %v192 = vadd.f32 %v190, %v191
    %v193 = vmul.f32 %v128, %v183
    %v194 = vmul.f32 %v132, %v179
    %v195 = vsub.f32 %v193, %v194
    %vm196 = vcmp.lt.f32.partialorder %v186, 0.0
    %v197 = vsel %vm196, -1.0, 1.0
    %v198 = vmul.f32 %v186, %v197
    %199 = vst [vmem:[#allocation11] sm:$0xff] %v198
    %v200 = vmul.f32 %v189, %v197
    %s201 = scalar_lea.vmem [#allocation11], 8
    %202 = vst [vmem:[%s201] sm:$0xff] %v200
    %v203 = vmul.f32 %v192, %v197
    %s204 = scalar_lea.vmem [#allocation11], 16
    %205 = vst [vmem:[%s204] sm:$0xff] %v203
    %v206 = vmul.f32 %v195, %v197
    %s207 = scalar_lea.vmem [#allocation11], 24
    %208 = vst [vmem:[%s207] sm:$0xff] %v206
    %v209 = vlaneseq
    %v210 = vshrl.u32 %v209, 7
    %v211 = vsub.s32 0, %v210
    %v212 = vrot.slane %v70, %v211
    %v213 = vsub.f32 %v70, %v212
    %v214 = vlaneseq
    %v215 = vshrl.u32 %v214, 7
    %v216 = vsub.s32 0, %v215
    %v217 = vrot.slane %v74, %v216
    %v218 = vsub.f32 %v74, %v217
    %v219 = vmul.f32 %v120, %v213
    %v220 = vmul.f32 %v124, %v218
    %v221 = vadd.f32 %v219, %v220
    %222 = vst [vmem:[#allocation9] sm:$0xff] %v221
    %s223 = scalar_lea.vmem [#allocation9], 8
    %224 = vst [vmem:[%s223] sm:$0xff] %v72
    %v225 = vmul.f32 %v120, %v218
    %v226 = vmul.f32 %v124, %v213
    %v227 = vsub.f32 %v225, %v226
    %s228 = scalar_lea.vmem [#allocation9], 16
    %229 = vst [vmem:[%s228] sm:$0xff] %v227
    // Predicated region
    $region26: #{tpu_custom_call.1} parent=1 // pred_check
      _
    $region27: #{tpu_custom_call.1} parent=1 // pred_check_branch
      %231 = sbr.rel (0) target = $region29
    $region28: #{tpu_custom_call.1} parent=1 // pred_region
      %s233 = ssub.s32 384, 384
      %234 = vsyncadd [#allocation4], %s233
      %s235 = sshll.u32 [#allocation8], 4
      %s236 = int_to_ptr.vmem [resolvable:$true] %s235
      %241 = dma.vmem_to_hbm [thread:$0]  %s236, 384, %s3, [#allocation4], 128, 128, 8
    $region29: #{tpu_custom_call.1} parent=1 // pred_fallthru
      _
    // Predicated region
    $region30: #{tpu_custom_call.1} parent=1 // pred_check
      _
    $region31: #{tpu_custom_call.1} parent=1 // pred_check_branch
      %243 = sbr.rel (0) target = $region33
    $region32: #{tpu_custom_call.1} parent=1 // pred_region
      %s245 = ssub.s32 384, 384
      %246 = vsyncadd [#allocation10], %s245
      %s247 = sshll.u32 [#allocation9], 4
      %s248 = int_to_ptr.vmem [resolvable:$true] %s247
      %253 = dma.vmem_to_hbm [thread:$0]  %s248, 384, %s4, [#allocation10], 128, 128, 8
    $region33: #{tpu_custom_call.1} parent=1 // pred_fallthru
      _
    // Predicated region
    $region34: #{tpu_custom_call.1} parent=1 // pred_check
      _
    $region35: #{tpu_custom_call.1} parent=1 // pred_check_branch
      %255 = sbr.rel (0) target = $region37
    $region36: #{tpu_custom_call.1} parent=1 // pred_region
      %s257 = ssub.s32 512, 512
      %258 = vsyncadd [#allocation10], %s257
      %s259 = sshll.u32 [#allocation11], 4
      %s260 = int_to_ptr.vmem [resolvable:$true] %s259
      %265 = dma.vmem_to_hbm [thread:$0]  %s260, 512, %s5, [#allocation10], 128, 128, 8
    $region37: #{tpu_custom_call.1} parent=1 // pred_fallthru
      _
    // Predicated region
    $region38: #{tpu_custom_call.1} parent=1 // pred_check
      _
    $region39: #{tpu_custom_call.1} parent=1 // pred_check_branch
      %267 = sbr.rel (0) target = $region41
    $region40: #{tpu_custom_call.1} parent=1 // pred_region
      %s269 = ssub.s32 64, 64
      %270 = vsyncadd [#allocation13], %s269
      %s272 = sshll.u32 [#allocation12], 4
      %s273 = int_to_ptr.vmem [resolvable:$true] %s272
      %275 = dma.vmem_to_hbm [thread:$0]  %s273, 64, %s6, [#allocation13]
    $region41: #{tpu_custom_call.1} parent=1 // pred_fallthru
      _
    // Predicated region
    $region42: #{tpu_custom_call.1} parent=1 // pred_check
      _
    $region43: #{tpu_custom_call.1} parent=1 // pred_check_branch
      %277 = sbr.rel (0) target = $region45
    $region44: #{tpu_custom_call.1} parent=1 // pred_region
      %278 = dma.done [#allocation4], 384
    $region45: #{tpu_custom_call.1} parent=1 // pred_fallthru
      _
    // Predicated region
    $region46: #{tpu_custom_call.1} parent=1 // pred_check
      _
    $region47: #{tpu_custom_call.1} parent=1 // pred_check_branch
      %280 = sbr.rel (0) target = $region49
    $region48: #{tpu_custom_call.1} parent=1 // pred_region
      %281 = dma.done [#allocation10], 384
    $region49: #{tpu_custom_call.1} parent=1 // pred_fallthru
      _
    // Predicated region
    $region50: #{tpu_custom_call.1} parent=1 // pred_check
      _
    $region51: #{tpu_custom_call.1} parent=1 // pred_check_branch
      %283 = sbr.rel (0) target = $region53
    $region52: #{tpu_custom_call.1} parent=1 // pred_region
      %284 = dma.done [#allocation10], 512
    $region53: #{tpu_custom_call.1} parent=1 // pred_fallthru
      _
    // Predicated region
    $region54: #{tpu_custom_call.1} parent=1 // pred_check
      _
    $region55: #{tpu_custom_call.1} parent=1 // pred_check_branch
      %286 = sbr.rel (0) target = $region57
    $region56: #{tpu_custom_call.1} parent=1 // pred_region
      %287 = dma.done [#allocation13], 64
    $region57: #{tpu_custom_call.1} parent=1 // pred_fallthru
      _
    %288 = vsyncpa [#allocation3], 1
    %289 = vsyncpa [#allocation6], 1
    %290 = vsyncpa [#allocation4], 1
    %291 = vsyncpa [#allocation10], 1
    %292 = vsyncpa [#allocation13], 1

</llo_original>
